<compile_context>
chip_gen: v5e
topology: v5e:2x2
jax: 0.10.0
libtpu: 0.0.40
codegen_flags: <defaults>
</compile_context>

<pallas_src>
import jax
import jax.numpy as jnp
from jax.experimental import pallas as pl
from jax.experimental.pallas import tpu as pltpu

LANE = 128


def _dyt_kernel(alpha_ref, gamma_ref, beta_ref, x_ref, o_ref):
    # alpha_ref: (1,) f32 in SMEM; gamma/beta: (1, tc) VMEM; x/o: (tm, tc) VMEM.
    a = alpha_ref[0]                          # scalar, read once per step
    x = x_ref[...].astype(jnp.float32)
    g = gamma_ref[...].astype(jnp.float32)
    b = beta_ref[...].astype(jnp.float32)
    y = g * jnp.tanh(a * x) + b               # f32 math; op is HBM-bound
    o_ref[...] = y.astype(o_ref.dtype)


def _round_up(a, b):
    return ((a + b - 1) // b) * b


def _vmem_capacity_bytes():
    """Physical per-core VMEM; conservative (v7x) fallback if query fails."""
    try:
        info = pltpu.get_tpu_info()
        cap = getattr(info, "vmem_capacity_bytes", None)
        if cap:
            return int(cap)
    except Exception:
        pass
    return 64 * 1024 * 1024


def dyt_forward(x, alpha, gamma, beta, *, tm=None, tc=None):
    """DyT forward. x: [..., C]; alpha: (1,); gamma/beta: (C,)."""
    orig_shape = x.shape
    C = orig_shape[-1]
    x2 = x.reshape(-1, C)
    M = x2.shape[0]
    itemsize = jnp.dtype(x2.dtype).itemsize

    gamma1 = gamma.reshape(-1)
    beta1 = beta.reshape(-1)

    # --- narrow-feature lane fold (unconditional; pad < k rows if needed) ---
    # Folding rows into the lane axis makes every output store a dense
    # 128-lane vst instead of a masked vst.msk on a C-lane slab.
    folded = False
    M_pad = M
    if C < LANE and LANE % C == 0:
        k = LANE // C
        rem = M % k
        if rem:
            M_pad = M + (k - rem)
            x2 = jnp.pad(x2, ((0, M_pad - M), (0, 0)))   # tiny (< k rows) pad
        x2 = x2.reshape(M_pad // k, k * C)
        gamma2 = jnp.tile(gamma1, (k,)).reshape(1, k * C)
        beta2 = jnp.tile(beta1, (k,)).reshape(1, k * C)
        M_work, C_eff = M_pad // k, k * C
        folded = True
    else:
        gamma2 = gamma1.reshape(1, C)
        beta2 = beta1.reshape(1, C)
        M_work, C_eff = M, C

    # --- generation-aware tile sizing --------------------------------------
    vmem_cap = _vmem_capacity_bytes()
    if vmem_cap >= 128 * 2**20:
        target_bytes = 4 * 2**20      # v5e / v6e: 85-86% roofline plateau
    else:
        target_bytes = 6 * 2**20      # v7x: 3.2 TB/s HBM -> bigger tiles pay
    vmem_limit = int(min(vmem_cap * 3 // 4, 4 * target_bytes + (16 << 20)))

    # Feature-axis tile: multiple of 128 when possible, else the full axis
    # (satisfies the (8,128)-or-full-dim block constraint).
    if tc is None:
        tc = min(C_eff, 2048) if C_eff % LANE == 0 else C_eff

    sub = 8 * max(1, 4 // itemsize)   # sublane packing: 8 f32 rows, 16 bf16
    if tm is None:
        bytes_per_row = tc * itemsize
        # Cap tile bytes so ~4x tile (in+out double-buffered) fits the budget;
        # guards the full-feature-axis path for wide non-128-multiple C.
        max_tile_bytes = max(bytes_per_row * sub,
                             min(target_bytes, (vmem_limit - (8 << 20)) // 4))
        tm = max(sub, min((max_tile_bytes // bytes_per_row) // sub * sub,
                          _round_up(M_work, sub)))
        # Megacore (v7x has 2 TCs): make sure at least two parallel blocks
        # exist when there are enough rows to split.
        if (pl.cdiv(M_work, tm) == 1 and pl.cdiv(C_eff, tc) == 1
                and M_work >= 2 * sub):
            tm_half = _round_up((M_work + 1) // 2, sub)
            if tm_half < M_work:
                tm = tm_half

    # If a single minimal tile still exceeds the chosen limit (huge ragged C),
    # raise the limit toward physical capacity rather than failing.
    tile_bytes = tm * tc * itemsize
    vmem_limit = max(vmem_limit,
                     min(int(vmem_cap * 9 // 10), 4 * tile_bytes + (8 << 20)))

    alpha1 = alpha.reshape(1).astype(jnp.float32)

    n_elem = M_work * C_eff
    cost = pl.CostEstimate(
        flops=3 * n_elem,
        transcendentals=n_elem,
        bytes_accessed=2 * n_elem * itemsize + 2 * C_eff * itemsize,
    )

    # Grid: feature axis OUTER, row axis INNER -> gamma/beta block index only
    # depends on the outer axis, so those tiles stay resident across the inner
    # row sweep instead of being re-DMA'd every step.
    grid = (pl.cdiv(C_eff, tc), pl.cdiv(M_work, tm))
    out = pl.pallas_call(
        _dyt_kernel,
        out_shape=jax.ShapeDtypeStruct((M_work, C_eff), x2.dtype),
        grid_spec=pl.GridSpec(
            grid=grid,
            in_specs=[
                pl.BlockSpec(memory_space=pltpu.MemorySpace.SMEM),   # alpha
                pl.BlockSpec((1, tc), lambda j, i: (0, j)),          # gamma
                pl.BlockSpec((1, tc), lambda j, i: (0, j)),          # beta
                pl.BlockSpec((tm, tc), lambda j, i: (i, j)),         # x tile
            ],
            out_specs=pl.BlockSpec((tm, tc), lambda j, i: (i, j)),
        ),
        compiler_params=pltpu.CompilerParams(
            dimension_semantics=("parallel", "parallel"),
            vmem_limit_bytes=vmem_limit),
        cost_estimate=cost,
    )(alpha1, gamma2, beta2, x2)

    if folded:
        out = out.reshape(M_pad, C)[:M]
    return out.reshape(orig_shape)


if __name__ == "__main__":
    key = jax.random.PRNGKey(0)
    kx, kg, kb = jax.random.split(key, 3)

    C = 32
    alpha = jnp.ones((1,), jnp.float32) * 0.5            # DyT init_alpha=0.5
    gamma = jax.random.normal(kg, (C,), dtype=jnp.float32)
    beta = jax.random.normal(kb, (C,), dtype=jnp.float32)

    # --- f32, lane-folded path (M=16 -> folded (4, 128)) ---
    x = jax.random.normal(kx, (2, 8, C), dtype=jnp.float32)
    y = dyt_forward(x, alpha, gamma, beta)
    jax.block_until_ready(y)
    y_ref = gamma * jnp.tanh(alpha * x) + beta
    assert y.shape == x.shape
    assert jnp.allclose(y, y_ref, atol=1e-5, rtol=1e-5)

    # --- f32, lane-folded path with row padding (M=15, k=4) ---
    x_odd = jax.random.normal(kx, (3, 5, C), dtype=jnp.float32)
    y_odd = dyt_forward(x_odd, alpha, gamma, beta)
    jax.block_until_ready(y_odd)
    y_odd_ref = gamma * jnp.tanh(alpha * x_odd) + beta
    assert y_odd.shape == x_odd.shape
    assert jnp.allclose(y_odd, y_odd_ref, atol=1e-5, rtol=1e-5)

    # --- f32, wide lane-aligned feature axis with partial row tail (C=256, M=14) ---
    C2 = 256
    gamma_w = jax.random.normal(kg, (C2,), dtype=jnp.float32)
    beta_w = jax.random.normal(kb, (C2,), dtype=jnp.float32)
    x_wide = jax.random.normal(kx, (2, 7, C2), dtype=jnp.float32)
    y_wide = dyt_forward(x_wide, alpha, gamma_w, beta_w)
    jax.block_until_ready(y_wide)
    y_wide_ref = gamma_w * jnp.tanh(alpha * x_wide) + beta_w
    assert jnp.allclose(y_wide, y_wide_ref, atol=1e-5, rtol=1e-5)

    # --- bf16 I/O path (compute in f32 inside the kernel) ---
    x_bf = jax.random.normal(kx, (4, 16, C), dtype=jnp.float32).astype(jnp.bfloat16)
    y_bf = dyt_forward(x_bf, alpha, gamma, beta)
    jax.block_until_ready(y_bf)
    y_bf_ref = gamma * jnp.tanh(alpha * x_bf.astype(jnp.float32)) + beta
    assert y_bf.dtype == jnp.bfloat16
    assert jnp.allclose(y_bf.astype(jnp.float32), y_bf_ref, atol=3e-2, rtol=3e-2)

    print("KERNEL_OK")
</pallas_src>

<mosaic_0001>
module attributes {stable_mosaic.version = 11 : i64} {
  func.func @_dyt_kernel(%arg0: i32, %arg1: i32, %arg2: memref<1xf32, #tpu.memory_space<smem>>, %arg3: memref<1x128xf32, #tpu.memory_space<vmem>>, %arg4: memref<1x128xf32, #tpu.memory_space<vmem>>, %arg5: memref<8x128xf32, #tpu.memory_space<vmem>>, %arg6: memref<8x128xf32, #tpu.memory_space<vmem>>) attributes {dimension_semantics = [#tpu.dimension_semantics<parallel>, #tpu.dimension_semantics<parallel>], iteration_bounds = array<i64: 1, 1>, scalar_prefetch = 0 : i64, scratch_operands = 0 : i64, tpu.core_type = #tpu.core_type<tc>, window_params = [{transform_indices = @transform_0, window_bounds = array<i64: 1>}, {transform_indices = @transform_1, window_bounds = array<i64: 1, 128>}, {transform_indices = @transform_2, window_bounds = array<i64: 1, 128>}, {transform_indices = @transform_3, window_bounds = array<i64: 8, 128>}, {transform_indices = @transform_4, window_bounds = array<i64: 8, 128>}]} {
    %c0 = arith.constant 0 : index
    %0 = memref.load %arg2[%c0] : memref<1xf32, #tpu.memory_space<smem>>
    %c0_0 = arith.constant 0 : index
    %c0_1 = arith.constant 0 : index
    %1 = vector.load %arg5[%c0_0, %c0_1] : memref<8x128xf32, #tpu.memory_space<vmem>>, vector<8x128xf32>
    %c0_2 = arith.constant 0 : index
    %c0_3 = arith.constant 0 : index
    %2 = vector.load %arg3[%c0_2, %c0_3] : memref<1x128xf32, #tpu.memory_space<vmem>>, vector<1x128xf32>
    %c0_4 = arith.constant 0 : index
    %c0_5 = arith.constant 0 : index
    %3 = vector.load %arg4[%c0_4, %c0_5] : memref<1x128xf32, #tpu.memory_space<vmem>>, vector<1x128xf32>
    %4 = vector.broadcast %0 : f32 to vector<8x128xf32>
    %5 = arith.mulf %4, %1 : vector<8x128xf32>
    %6 = math.tanh %5 : vector<8x128xf32>
    %7 = vector.broadcast %2 : vector<1x128xf32> to vector<8x128xf32>
    %8 = arith.mulf %7, %6 : vector<8x128xf32>
    %9 = vector.broadcast %3 : vector<1x128xf32> to vector<8x128xf32>
    %10 = arith.addf %8, %9 : vector<8x128xf32>
    %c0_6 = arith.constant 0 : index
    %c0_7 = arith.constant 0 : index
    %11 = vector.load %arg6[%c0_6, %c0_7] : memref<8x128xf32, #tpu.memory_space<vmem>>, vector<8x128xf32>
    tpu.vector_store %arg6[%c0_6, %c0_7], %10 {strides = array<i32>} : memref<8x128xf32, #tpu.memory_space<vmem>>, vector<8x128xf32>,
    return
  }
  func.func @transform_0(%arg0: i32, %arg1: i32) -> i32 {
    %c0_i32 = arith.constant 0 : i32
    %c0_i32_0 = arith.constant 0 : i32
    return %c0_i32 : i32
  }
  func.func @transform_1(%arg0: i32, %arg1: i32) -> (i32, i32) {
    %c0_i32 = arith.constant 0 : i32
    %c0_i32_0 = arith.constant 0 : i32
    return %c0_i32, %arg0 : i32, i32
  }
  func.func @transform_2(%arg0: i32, %arg1: i32) -> (i32, i32) {
    %c0_i32 = arith.constant 0 : i32
    %c0_i32_0 = arith.constant 0 : i32
    return %c0_i32, %arg0 : i32, i32
  }
  func.func @transform_3(%arg0: i32, %arg1: i32) -> (i32, i32) {
    %c0_i32 = arith.constant 0 : i32
    return %arg1, %arg0 : i32, i32
  }
  func.func @transform_4(%arg0: i32, %arg1: i32) -> (i32, i32) {
    %c0_i32 = arith.constant 0 : i32
    return %arg1, %arg0 : i32, i32
  }
}

</mosaic_0001>

<llo_original>
// kernel: tpu_custom_call.1
$region0: #{tpu_custom_call.1}
  #allocation0 [shape = 'u32[]', space=smem, size = 0x4, offset = 0x4, fixed_abs, tag = 'smem constant byte address 0x4 - core index']
  #allocation1 [shape = 'u32[72,128]{1,0:T(1,128)}', space=vmem, size = 0x9000, scoped, tag = 'internal scratch']
  #allocation2 [shape = 'f32[1]{0:T(128)S(6)}', space=smem, size = 0x200, scoped, tag = 'scoped memory for tpu_custom_call.1']
  %s0 = inlined_call_operand.<no memory space> [shape: f32[1], index: 0, kind: input, shape index: {}]
  %s1 = inlined_call_operand.vmem [shape: f32[1,128], index: 1, kind: input, shape index: {}]
  %s2 = inlined_call_operand.vmem [shape: f32[1,128], index: 2, kind: input, shape index: {}]
  %s3 = inlined_call_operand.hbm [shape: f32[4,128], index: 3, kind: input, shape index: {}]
  %s4 = inlined_call_operand.hbm [shape: f32[4,128], index: 4, kind: output, shape index: {}]
  %s5 = sld [smem:[#allocation0]]
  $region30: #{tpu_custom_call.1} parent=0
    _
  %s7 = ssub.s32 1, %s5
  %s8 = scalar_select 0, %s7, %s5
  %9 = sst [smem:[#allocation2]] %s0
  $region1: #{tpu_custom_call.1} parent=0
    #allocation3 [shape = 'u8[4096]{0}', space=vmem, size = 0x1000, scoped, tag = 'input window, operand 3, single buffered']
    #allocation4 [shape = 's32[1]{0}', space=sflag, size = 0x4, scoped, tag = 'scoped memory for tpu_custom_call.1']
    #allocation5 [shape = 's32[1]{0}', space=sflag, size = 0x4, scoped, tag = 'scoped memory for tpu_custom_call.1']
    #allocation6 [shape = 'u8[4096]{0}', space=vmem, size = 0x1000, scoped, tag = 'output window, operand 0, single buffered']
    %10 = vsyncpa [#allocation4], 0
    %11 = vsyncpa [#allocation5], 0
    // Predicated region
    $region2: #{tpu_custom_call.1} parent=1 // pred_check
      _
    $region3: #{tpu_custom_call.1} parent=1 // pred_check_branch
      %13 = sbr.rel (0) target = $region5
    $region4: #{tpu_custom_call.1} parent=1 // pred_region
      _
    $region5: #{tpu_custom_call.1} parent=1 // pred_fallthru
      _
    // Predicated region
    $region6: #{tpu_custom_call.1} parent=1 // pred_check
      _
    $region7: #{tpu_custom_call.1} parent=1 // pred_check_branch
      %15 = sbr.rel (0) target = $region9
    $region8: #{tpu_custom_call.1} parent=1 // pred_region
      _
    $region9: #{tpu_custom_call.1} parent=1 // pred_fallthru
      _
    // Predicated region
    $region10: #{tpu_custom_call.1} parent=1 // pred_check
      _
    $region11: #{tpu_custom_call.1} parent=1 // pred_check_branch
      %17 = sbr.rel (0) target = $region13
    $region12: #{tpu_custom_call.1} parent=1 // pred_region
      _
    $region13: #{tpu_custom_call.1} parent=1 // pred_fallthru
      _
    // Predicated region
    $region14: #{tpu_custom_call.1} parent=1 // pred_check
      _
    $region15: #{tpu_custom_call.1} parent=1 // pred_check_branch
      %19 = sbr.rel (0) target = $region17
    $region16: #{tpu_custom_call.1} parent=1 // pred_region
      %21 = vsyncadd [#allocation4], 64
      %s22 = sshll.u32 %s3, 4
      %s23 = int_to_ptr.hbm [resolvable:$true] %s22
      %s24 = sshll.u32 [#allocation3], 4
      %s25 = int_to_ptr.vmem [resolvable:$true] %s24
      %30 = dma.hbm_to_vmem [thread:$0]  %s23, 64, %s25, [#allocation4], 64, 64, 4
    $region17: #{tpu_custom_call.1} parent=1 // pred_fallthru
      _
    // Predicated region
    $region18: #{tpu_custom_call.1} parent=1 // pred_check
      _
    $region19: #{tpu_custom_call.1} parent=1 // pred_check_branch
      %32 = sbr.rel (0) target = $region21
    $region20: #{tpu_custom_call.1} parent=1 // pred_region
      %34 = dma.done [#allocation4], 128
    $region21: #{tpu_custom_call.1} parent=1 // pred_fallthru
      _
    %s35 = sld [smem:[#allocation2]]
    %v36 = vld [vmem:[#allocation3] sm:$0xff]
    %v37 = vld [vmem:[%s1] sm:$0x1]
    %v38 = vld [vmem:[%s2] sm:$0x1]
    %v39 = vstv %s35
    %v40 = vmul.f32 %v39, %v36
    %v41 = vtanh.pop %v40
    %v43 = vperm.slane %v37, 0
    %v45 = vmul.f32 %v43, %v41
    %v47 = vperm.slane %v38, 0
    %v49 = vadd.f32 %v45, %v47
    %50 = vst [vmem:[#allocation6] sm:$0xff] %v49
    // Predicated region
    $region22: #{tpu_custom_call.1} parent=1 // pred_check
      _
    $region23: #{tpu_custom_call.1} parent=1 // pred_check_branch
      %52 = sbr.rel (0) target = $region25
    $region24: #{tpu_custom_call.1} parent=1 // pred_region
      %54 = vsyncadd [#allocation5], 64
      %s55 = sshll.u32 [#allocation6], 4
      %s56 = int_to_ptr.vmem [resolvable:$true] %s55
      %s57 = sshll.u32 %s4, 4
      %s58 = int_to_ptr.hbm [resolvable:$true] %s57
      %63 = dma.vmem_to_hbm [thread:$0]  %s56, 64, %s58, [#allocation5], 64, 64, 4
    $region25: #{tpu_custom_call.1} parent=1 // pred_fallthru
      _
    // Predicated region
    $region26: #{tpu_custom_call.1} parent=1 // pred_check
      _
    $region27: #{tpu_custom_call.1} parent=1 // pred_check_branch
      %65 = sbr.rel (0) target = $region29
    $region28: #{tpu_custom_call.1} parent=1 // pred_region
      %67 = dma.done [#allocation5], 128
    $region29: #{tpu_custom_call.1} parent=1 // pred_fallthru
      _
    %68 = vsyncpa [#allocation4], 1
    %69 = vsyncpa [#allocation5], 1

</llo_original>
